<compile_context>
chip_gen: v5e
topology: v5e:2x2
jax: 0.10.0
libtpu: 0.0.40
codegen_flags: <defaults>
</compile_context>

<pallas_src>
import functools

import jax
import jax.numpy as jnp
import numpy as np
from jax.experimental import pallas as pl
from jax.experimental.pallas import tpu as pltpu

# ---------------- static configuration (small example shapes) ----------------
B = 2          # batch
C = 4          # channels
N_TOTAL = 20   # total graph nodes (weight/bias second dim)
N_SEL = 16     # nodes selected by idx for this forward call
T = 8          # sequence length
EPS = 1e-5


# ---------------- Pallas kernel ----------------------------------------------
def _layernorm_kernel(x_ref, w_ref, b_ref, o_ref, *, inv_m, eps):
    """One batch row per grid step.

    x_ref / o_ref : (1, R, L)   with R*L = M = C*N_sel*T  (sublane-packed)
    w_ref / b_ref : (R, L)      gathered affine params, resident across steps
    """
    x = x_ref[...].astype(jnp.float32)                       # (1, R, L) f32
    # Fused single pass: sum and sum-of-squares together (XLU reduce + VPU mul
    # run concurrently instead of reduce -> center -> reduce).
    s1 = jnp.sum(x, axis=(-2, -1), keepdims=True)
    s2 = jnp.sum(x * x, axis=(-2, -1), keepdims=True)
    mean = s1 * inv_m
    var = jnp.maximum(s2 * inv_m - mean * mean, 0.0)         # biased variance
    inv_std = jax.lax.rsqrt(var + eps)                        # EUP (free slot)
    w = w_ref[...].astype(jnp.float32)                        # (R, L) -> bcast
    b = b_ref[...].astype(jnp.float32)
    o_ref[...] = ((x - mean) * inv_std * w + b).astype(o_ref.dtype)


# ---------------- wrapper -----------------------------------------------------
def layer_norm_forward(x, weight, bias, idx, eps=EPS):
    """x: (B, C, N_sel, T); weight/bias: (C, N_total, T); idx: (N_sel,) int."""
    bsz, c, n_sel, t = x.shape
    m = c * n_sel * t

    # Sublane-packed, lane-dense layout: (B, R, L) with L = 128 when possible.
    # Contiguous row-major reshape -> metadata only, no extra HBM traffic.
    if m % 128 == 0:
        lanes = 128
    else:
        lanes = m          # fallback: full-array block, still correct (masked)
    rows = m // lanes

    x3 = x.reshape(bsz, rows, lanes)
    # Tiny parameter gather, done once in the wrapper (native dtype, no cast).
    w_sel = weight[:, idx, :].reshape(rows, lanes)
    b_sel = bias[:, idx, :].reshape(rows, lanes)

    kernel = functools.partial(_layernorm_kernel, inv_m=1.0 / m, eps=eps)

    out3 = pl.pallas_call(
        kernel,
        out_shape=jax.ShapeDtypeStruct((bsz, rows, lanes), x.dtype),
        grid=(bsz,),
        in_specs=[
            pl.BlockSpec((1, rows, lanes), lambda b: (b, 0, 0)),   # x row
            pl.BlockSpec((rows, lanes), lambda b: (0, 0)),         # weight (resident)
            pl.BlockSpec((rows, lanes), lambda b: (0, 0)),         # bias   (resident)
        ],
        out_specs=pl.BlockSpec((1, rows, lanes), lambda b: (b, 0, 0)),
        compiler_params=pltpu.CompilerParams(
            dimension_semantics=("parallel",)),
    )(x3, w_sel, b_sel)

    return out3.reshape(bsz, c, n_sel, t)


# ---------------- pure-JAX reference (mirrors F.layer_norm path) -------------
def layer_norm_reference(x, weight, bias, idx, eps=EPS):
    xf = x.astype(jnp.float32)
    axes = (1, 2, 3)
    mean = jnp.mean(xf, axis=axes, keepdims=True)
    var = jnp.mean((xf - mean) ** 2, axis=axes, keepdims=True)   # biased var
    y = (xf - mean) / jnp.sqrt(var + eps)
    out = y * weight[None, :, idx, :] + bias[None, :, idx, :]
    return out.astype(x.dtype)


# ---------------- main --------------------------------------------------------
if __name__ == "__main__":
    key = jax.random.PRNGKey(0)
    k_x, k_w, k_b, k_i = jax.random.split(key, 4)

    x = jax.random.normal(k_x, (B, C, N_SEL, T), dtype=jnp.float32)

    # Affine params (module inits to ones/zeros; use random values to actually
    # exercise the affine path as it looks after training).
    weight = 1.0 + 0.1 * jax.random.normal(k_w, (C, N_TOTAL, T), dtype=jnp.float32)
    bias = 0.1 * jax.random.normal(k_b, (C, N_TOTAL, T), dtype=jnp.float32)

    # Deterministic node-index selection (as MTGODE passes a node subset).
    idx = jnp.sort(jax.random.permutation(k_i, N_TOTAL)[:N_SEL]).astype(jnp.int32)

    out_kernel = jax.block_until_ready(layer_norm_forward(x, weight, bias, idx))
    out_ref = jax.block_until_ready(layer_norm_reference(x, weight, bias, idx))

    assert out_kernel.shape == (B, C, N_SEL, T), out_kernel.shape
    assert out_kernel.dtype == x.dtype, out_kernel.dtype
    np.testing.assert_allclose(np.asarray(out_kernel), np.asarray(out_ref),
                               rtol=1e-5, atol=1e-5)
    print("KERNEL_OK")
</pallas_src>

<mosaic_0001>
module attributes {stable_mosaic.version = 11 : i64} {
  func.func @_layernorm_kernel(%arg0: i32, %arg1: memref<1x4x128xf32, #tpu.memory_space<vmem>>, %arg2: memref<4x128xf32, #tpu.memory_space<vmem>>, %arg3: memref<4x128xf32, #tpu.memory_space<vmem>>, %arg4: memref<1x4x128xf32, #tpu.memory_space<vmem>>) attributes {dimension_semantics = [#tpu.dimension_semantics<parallel>], iteration_bounds = array<i64: 2>, scalar_prefetch = 0 : i64, scratch_operands = 0 : i64, tpu.core_type = #tpu.core_type<tc>, window_params = [{transform_indices = @transform_0, window_bounds = array<i64: 1, 4, 128>}, {pipeline_mode = #tpu.pipeline_mode<synchronous>, transform_indices = @transform_1, window_bounds = array<i64: 4, 128>}, {pipeline_mode = #tpu.pipeline_mode<synchronous>, transform_indices = @transform_2, window_bounds = array<i64: 4, 128>}, {transform_indices = @transform_3, window_bounds = array<i64: 1, 4, 128>}]} {
    %c0 = arith.constant 0 : index
    %c0_0 = arith.constant 0 : index
    %c0_1 = arith.constant 0 : index
    %0 = vector.load %arg1[%c0, %c0_0, %c0_1] : memref<1x4x128xf32, #tpu.memory_space<vmem>>, vector<1x4x128xf32>
    %cst = arith.constant dense<0.000000e+00> : vector<1xf32>
    %1 = vector.multi_reduction <add>, %0, %cst [1, 2] : vector<1x4x128xf32> to vector<1xf32>
    %2 = vector.shape_cast %1 : vector<1xf32> to vector<1x1x1xf32>
    %3 = arith.mulf %0, %0 : vector<1x4x128xf32>
    %cst_2 = arith.constant dense<0.000000e+00> : vector<1xf32>
    %4 = vector.multi_reduction <add>, %3, %cst_2 [1, 2] : vector<1x4x128xf32> to vector<1xf32>
    %5 = vector.shape_cast %4 : vector<1xf32> to vector<1x1x1xf32>
    %cst_3 = arith.constant 0.001953125 : f32
    %6 = vector.broadcast %cst_3 : f32 to vector<1x1x1xf32>
    %7 = arith.mulf %2, %6 : vector<1x1x1xf32>
    %cst_4 = arith.constant 0.001953125 : f32
    %8 = vector.broadcast %cst_4 : f32 to vector<1x1x1xf32>
    %9 = arith.mulf %5, %8 : vector<1x1x1xf32>
    %10 = arith.mulf %7, %7 : vector<1x1x1xf32>
    %11 = arith.subf %9, %10 : vector<1x1x1xf32>
    %cst_5 = arith.constant 0.000000e+00 : f32
    %12 = vector.broadcast %cst_5 : f32 to vector<1x1x1xf32>
    %13 = arith.maximumf %11, %12 : vector<1x1x1xf32>
    %cst_6 = arith.constant 9.99999974E-6 : f32
    %14 = vector.broadcast %cst_6 : f32 to vector<1x1x1xf32>
    %15 = arith.addf %13, %14 : vector<1x1x1xf32>
    %16 = math.rsqrt %15 : vector<1x1x1xf32>
    %c0_7 = arith.constant 0 : index
    %c0_8 = arith.constant 0 : index
    %17 = vector.load %arg2[%c0_7, %c0_8] : memref<4x128xf32, #tpu.memory_space<vmem>>, vector<4x128xf32>
    %c0_9 = arith.constant 0 : index
    %c0_10 = arith.constant 0 : index
    %18 = vector.load %arg3[%c0_9, %c0_10] : memref<4x128xf32, #tpu.memory_space<vmem>>, vector<4x128xf32>
    %19 = vector.broadcast %7 : vector<1x1x1xf32> to vector<1x4x128xf32>
    %20 = arith.subf %0, %19 : vector<1x4x128xf32>
    %21 = vector.broadcast %16 : vector<1x1x1xf32> to vector<1x4x128xf32>
    %22 = arith.mulf %20, %21 : vector<1x4x128xf32>
    %23 = vector.shape_cast %17 : vector<4x128xf32> to vector<1x4x128xf32>
    %24 = arith.mulf %22, %23 : vector<1x4x128xf32>
    %25 = vector.shape_cast %18 : vector<4x128xf32> to vector<1x4x128xf32>
    %26 = arith.addf %24, %25 : vector<1x4x128xf32>
    %c0_11 = arith.constant 0 : index
    %c0_12 = arith.constant 0 : index
    %c0_13 = arith.constant 0 : index
    %27 = vector.load %arg4[%c0_11, %c0_12, %c0_13] : memref<1x4x128xf32, #tpu.memory_space<vmem>>, vector<1x4x128xf32>
    tpu.vector_store %arg4[%c0_11, %c0_12, %c0_13], %26 {strides = array<i32>} : memref<1x4x128xf32, #tpu.memory_space<vmem>>, vector<1x4x128xf32>,
    return
  }
  func.func @transform_0(%arg0: i32) -> (i32, i32, i32) {
    %c0_i32 = arith.constant 0 : i32
    %c0_i32_0 = arith.constant 0 : i32
    %c0_i32_1 = arith.constant 0 : i32
    return %arg0, %c0_i32, %c0_i32_0 : i32, i32, i32
  }
  func.func @transform_1(%arg0: i32) -> (i32, i32) {
    %c0_i32 = arith.constant 0 : i32
    %c0_i32_0 = arith.constant 0 : i32
    %c0_i32_1 = arith.constant 0 : i32
    return %c0_i32, %c0_i32_0 : i32, i32
  }
  func.func @transform_2(%arg0: i32) -> (i32, i32) {
    %c0_i32 = arith.constant 0 : i32
    %c0_i32_0 = arith.constant 0 : i32
    %c0_i32_1 = arith.constant 0 : i32
    return %c0_i32, %c0_i32_0 : i32, i32
  }
  func.func @transform_3(%arg0: i32) -> (i32, i32, i32) {
    %c0_i32 = arith.constant 0 : i32
    %c0_i32_0 = arith.constant 0 : i32
    %c0_i32_1 = arith.constant 0 : i32
    return %arg0, %c0_i32, %c0_i32_0 : i32, i32, i32
  }
}

</mosaic_0001>

<llo_original>
// kernel: tpu_custom_call.1
$region0: #{tpu_custom_call.1}
  #allocation0 [shape = 'u32[]', space=smem, size = 0x4, offset = 0x4, fixed_abs, tag = 'smem constant byte address 0x4 - core index']
  #allocation1 [shape = 'u32[72,128]{1,0:T(1,128)}', space=vmem, size = 0x9000, scoped, tag = 'internal scratch']
  %s0 = inlined_call_operand.hbm [shape: f32[2,4,128], index: 0, kind: input, shape index: {}]
  %s1 = inlined_call_operand.hbm [shape: f32[4,128], index: 1, kind: input, shape index: {}]
  %s2 = inlined_call_operand.hbm [shape: f32[4,128], index: 2, kind: input, shape index: {}]
  %s3 = inlined_call_operand.hbm [shape: f32[2,4,128], index: 3, kind: output, shape index: {}]
  %s4 = sld [smem:[#allocation0]]
  $region57: #{tpu_custom_call.1} parent=0
    _
  %s6 = ssub.s32 1, %s4
  %s7 = scalar_select 0, %s6, %s4
  $region1: #{tpu_custom_call.1} parent=0
    #allocation2 [shape = 'u8[4096]{0}', space=vmem, size = 0x1000, scoped, tag = 'input window, operand 0']
    #allocation3 [shape = 's32[2]{0}', space=sflag, size = 0x8, scoped, tag = 'scoped memory for tpu_custom_call.1']
    #allocation4 [shape = 's32[2]{0}', space=sflag, size = 0x8, scoped, tag = 'scoped memory for tpu_custom_call.1']
    #allocation5 [shape = 'u8[2048]{0}', space=vmem, size = 0x800, scoped, tag = 'input window, operand 1, single buffered']
    #allocation6 [shape = 's32[1]{0}', space=sflag, size = 0x4, scoped, tag = 'scoped memory for tpu_custom_call.1']
    #allocation7 [shape = 'u8[2048]{0}', space=vmem, size = 0x800, scoped, tag = 'input window, operand 2, single buffered']
    #allocation8 [shape = 'u8[4096]{0}', space=vmem, size = 0x1000, scoped, tag = 'output window, operand 0']
    %8 = vsyncpa [#allocation3], 0
    %s9 = scalar_lea.sflag [#allocation3], 1
    %10 = vsyncpa %s9, 0
    %11 = vsyncpa [#allocation6], 0
    %12 = vsyncpa [#allocation4], 0
    %s13 = scalar_lea.sflag [#allocation4], 1
    %14 = vsyncpa %s13, 0
    loop: start=0, step=1, limit=4
    $region2: #{tpu_custom_call.1} parent=1 // loop_pre_header
      _
    $region3: #{tpu_custom_call.1} parent=1 // loop_header
      %s16 = sphi 0, %s20
      %p17 = scmp.ge.s32.totalorder %s16, 4
      %s26 = sphi 0, %s28
      %s29 = sphi 0, %s26
      %s30 = sphi 0, %s29
      %s46 = sphi 0, %s30
      %s50 = sphi 0, %s50
      %s52 = sphi 0, %s50
      %s53 = sphi 0, %s52
      %s67 = sphi 0, %s53
      %s71 = sphi 0, %s71
      %s73 = sphi 0, %s71
      %s74 = sphi 0, %s73
      %s88 = sphi 0, %s74
      %s94 = sphi 0, %s96
      %s97 = sphi 0, %s94
      %s98 = sphi 0, %s97
      %s114 = sphi 0, %s98
    $region4: #{tpu_custom_call.1} parent=1 // loop_header_branch
      %19 = sbr.rel (%p17) target = $region8
    $region5: #{tpu_custom_call.1} parent=1 // loop_body
      %s21 = ssub.s32 %s16, 1
      %s22 = ssub.s32 %s16, 2
      %s23 = sadd.s32 %s16, 1
      %s24 = ssub.s32 %s16, %s23
      %p25 = scmp.eq.s32.totalorder %s24, 0
      %s27 = sadd.s32 %s26, 1
      %s28 = scalar_select %p25, %s26, %s27
      %p31 = pneg %p25
      %p32 = scmp.eq.s32.totalorder %s16, 1
      %p33 = por %p31, %p32
      %p34 = scmp.ne.s32.totalorder %s26, %s29
      %p35 = scmp.eq.s32.totalorder %s16, 0
      %p36 = por %p34, %p35
      %p37 = scmp.ne.s32.totalorder %s26, %s29
      %p38 = scmp.eq.s32.totalorder %s21, 1
      %p39 = por %p37, %p38
      %p40 = scmp.ne.s32.totalorder %s29, %s30
      %p41 = scmp.eq.s32.totalorder %s21, 0
      %p42 = por %p40, %p41
      %p43 = scmp.ne.s32.totalorder %s29, %s30
      %p44 = scmp.eq.s32.totalorder %s22, 1
      %p45 = por %p43, %p44
      %p47 = scmp.ne.s32.totalorder %s30, %s46
      %p48 = scmp.eq.s32.totalorder %s22, 0
      %p49 = por %p47, %p48
      %s51 = sadd.s32 %s50, 1
      %p54 = scmp.eq.s32.totalorder %s16, 1
      %p55 = scmp.ne.s32.totalorder %s50, %s52
      %p56 = scmp.eq.s32.totalorder %s16, 0
      %p57 = por %p55, %p56
      %p58 = scmp.ne.s32.totalorder %s50, %s52
      %p59 = scmp.eq.s32.totalorder %s21, 1
      %p60 = por %p58, %p59
      %p61 = scmp.ne.s32.totalorder %s52, %s53
      %p62 = scmp.eq.s32.totalorder %s21, 0
      %p63 = por %p61, %p62
      %p64 = scmp.ne.s32.totalorder %s52, %s53
      %p65 = scmp.eq.s32.totalorder %s22, 1
      %p66 = por %p64, %p65
      %p68 = scmp.ne.s32.totalorder %s53, %s67
      %p69 = scmp.eq.s32.totalorder %s22, 0
      %p70 = por %p68, %p69
      %s72 = sadd.s32 %s71, 1
      %p75 = scmp.eq.s32.totalorder %s16, 1
      %p76 = scmp.ne.s32.totalorder %s71, %s73
      %p77 = scmp.eq.s32.totalorder %s16, 0
      %p78 = por %p76, %p77
      %p79 = scmp.ne.s32.totalorder %s71, %s73
      %p80 = scmp.eq.s32.totalorder %s21, 1
      %p81 = por %p79, %p80
      %p82 = scmp.ne.s32.totalorder %s73, %s74
      %p83 = scmp.eq.s32.totalorder %s21, 0
      %p84 = por %p82, %p83
      %p85 = scmp.ne.s32.totalorder %s73, %s74
      %p86 = scmp.eq.s32.totalorder %s22, 1
      %p87 = por %p85, %p86
      %p89 = scmp.ne.s32.totalorder %s74, %s88
      %p90 = scmp.eq.s32.totalorder %s22, 0
      %p91 = por %p89, %p90
      %s92 = ssub.s32 %s16, %s23
      %p93 = scmp.eq.s32.totalorder %s92, 0
      %s95 = sadd.s32 %s94, 1
      %s96 = scalar_select %p93, %s94, %s95
      %p99 = pneg %p93
      %p100 = scmp.eq.s32.totalorder %s16, 1
      %p101 = por %p99, %p100
      %p102 = scmp.ne.s32.totalorder %s94, %s97
      %p103 = scmp.eq.s32.totalorder %s16, 0
      %p104 = por %p102, %p103
      %p105 = scmp.ne.s32.totalorder %s94, %s97
      %p106 = scmp.eq.s32.totalorder %s21, 1
      %p107 = por %p105, %p106
      %p108 = scmp.ne.s32.totalorder %s97, %s98
      %p109 = scmp.eq.s32.totalorder %s21, 0
      %p110 = por %p108, %p109
      %p111 = scmp.ne.s32.totalorder %s97, %s98
      %p112 = scmp.eq.s32.totalorder %s22, 1
      %p113 = por %p111, %p112
      %p115 = scmp.ne.s32.totalorder %s98, %s114
      %p116 = scmp.eq.s32.totalorder %s22, 0
      %p117 = por %p115, %p116
      %p118 = scmp.le.s32.totalorder 1, %s16
      %p119 = scmp.lt.s32.totalorder %s16, 3
      %p120 = pnand %p118, %p119
      %p121 = pneg %p120
      // Predicated region
      $region9: #{tpu_custom_call.1} parent=5 // pred_check
        _
      $region10: #{tpu_custom_call.1} parent=5 // pred_check_branch
        %123 = sbr.rel (%p120) target = $region12
      $region11: #{tpu_custom_call.1} parent=5 // pred_region
        %s124 = ssub.s32 %s16, 1
        // Predicated region
        $region13: #{tpu_custom_call.1} parent=11 // pred_check
          %p125 = pneg %p63
        $region14: #{tpu_custom_call.1} parent=11 // pred_check_branch
          %127 = sbr.rel (%p125) target = $region16
        $region15: #{tpu_custom_call.1} parent=11 // pred_region
          %129 = vsyncadd [#allocation6], 0
          %s131 = sshll.u32 %s1, 4
          %s132 = int_to_ptr.hbm [resolvable:$true] %s131
          %s133 = sshll.u32 [#allocation5], 4
          %s134 = int_to_ptr.vmem [resolvable:$true] %s133
          %136 = dma.hbm_to_vmem [thread:$0]  %s132, 64, %s134, [#allocation6]
        $region16: #{tpu_custom_call.1} parent=11 // pred_fallthru
          _
        // Predicated region
        $region17: #{tpu_custom_call.1} parent=11 // pred_check
          %p137 = pneg %p84
        $region18: #{tpu_custom_call.1} parent=11 // pred_check_branch
          %139 = sbr.rel (%p137) target = $region20
        $region19: #{tpu_custom_call.1} parent=11 // pred_region
          %141 = vsyncadd [#allocation6], 0
          %s143 = sshll.u32 %s2, 4
          %s144 = int_to_ptr.hbm [resolvable:$true] %s143
          %s145 = sshll.u32 [#allocation7], 4
          %s146 = int_to_ptr.vmem [resolvable:$true] %s145
          %148 = dma.hbm_to_vmem [thread:$0]  %s144, 64, %s146, [#allocation6]
        $region20: #{tpu_custom_call.1} parent=11 // pred_fallthru
          _
      $region12: #{tpu_custom_call.1} parent=5 // pred_fallthru
        _
      %p149 = scmp.lt.s32.totalorder %s16, 2
      // Predicated region
      $region21: #{tpu_custom_call.1} parent=5 // pred_check
        %p150 = pneg %p149
      $region22: #{tpu_custom_call.1} parent=5 // pred_check_branch
        %152 = sbr.rel (%p150) target = $region24
      $region23: #{tpu_custom_call.1} parent=5 // pred_region
        // Predicated region
        $region25: #{tpu_custom_call.1} parent=23 // pred_check
          %p153 = pneg %p36
        $region26: #{tpu_custom_call.1} parent=23 // pred_check_branch
          %155 = sbr.rel (%p153) target = $region28
        $region27: #{tpu_custom_call.1} parent=23 // pred_region
          %s156 = sand.u32 %s26, 1
          %s157 = scalar_lea.sflag [#allocation3], %s156
          %s158 = sand.u32 %s26, 1
          %s159 = smul.addr %s158, 4
          %s160 = scalar_lea.vmem [#allocation2], %s159
          %162 = vsyncadd %s157, 0
          %s163 = smul.addr %s16, 4
          %s164 = scalar_lea.hbm %s0, %s163
          %s166 = sshll.u32 %s164, 4
          %s167 = int_to_ptr.hbm [resolvable:$true] %s166
          %s168 = sshll.u32 %s160, 4
          %s169 = int_to_ptr.vmem [resolvable:$true] %s168
          %171 = dma.hbm_to_vmem [thread:$0]  %s167, 64, %s169, %s157
        $region28: #{tpu_custom_call.1} parent=23 // pred_fallthru
          _
      $region24: #{tpu_custom_call.1} parent=5 // pred_fallthru
        _
      %p172 = scmp.le.s32.totalorder 1, %s16
      %p173 = scmp.lt.s32.totalorder %s16, 3
      %p174 = pnand %p172, %p173
      %p175 = pneg %p174
      // Predicated region
      $region29: #{tpu_custom_call.1} parent=5 // pred_check
        _
      $region30: #{tpu_custom_call.1} parent=5 // pred_check_branch
        %177 = sbr.rel (%p174) target = $region32
      $region31: #{tpu_custom_call.1} parent=5 // pred_region
        %s178 = ssub.s32 %s16, 1
        %s179 = sand.u32 %s29, 1
        %s180 = scalar_lea.sflag [#allocation3], %s179
        %s181 = sand.u32 %s29, 1
        %s182 = smul.addr %s181, 4
        %s183 = scalar_lea.vmem [#allocation2], %s182
        // Predicated region
        $region33: #{tpu_custom_call.1} parent=31 // pred_check
          %p184 = pneg %p42
        $region34: #{tpu_custom_call.1} parent=31 // pred_check_branch
          %186 = sbr.rel (%p184) target = $region36
        $region35: #{tpu_custom_call.1} parent=31 // pred_region
          %188 = dma.done %s180, 64
        $region36: #{tpu_custom_call.1} parent=31 // pred_fallthru
          _
        // Predicated region
        $region37: #{tpu_custom_call.1} parent=31 // pred_check
          %p189 = pneg %p63
        $region38: #{tpu_custom_call.1} parent=31 // pred_check_branch
          %191 = sbr.rel (%p189) target = $region40
        $region39: #{tpu_custom_call.1} parent=31 // pred_region
          %193 = dma.done [#allocation6], 64
        $region40: #{tpu_custom_call.1} parent=31 // pred_fallthru
          _
        // Predicated region
        $region41: #{tpu_custom_call.1} parent=31 // pred_check
          %p194 = pneg %p84
        $region42: #{tpu_custom_call.1} parent=31 // pred_check_branch
          %196 = sbr.rel (%p194) target = $region44
        $region43: #{tpu_custom_call.1} parent=31 // pred_region
          %198 = dma.done [#allocation6], 64
        $region44: #{tpu_custom_call.1} parent=31 // pred_fallthru
          _
        %s199 = sand.u32 %s29, 1
        %s200 = scalar_lea.sflag [#allocation3], %s199
        %s201 = sand.u32 %s29, 1
        %s202 = smul.addr %s201, 4
        %s203 = scalar_lea.vmem [#allocation2], %s202
        %p204 = pneg %p42
        %p205 = pneg %p39
        %p206 = pneg %p63
        %p207 = pneg %p60
        %p208 = pneg %p84
        %p209 = pneg %p81
        %p210 = pneg %p110
        %p211 = pneg %p107
        %s212 = sand.u32 %s97, 1
        %s213 = scalar_lea.sflag [#allocation4], %s212
        %s214 = sand.u32 %s97, 1
        %s215 = smul.addr %s214, 4
        %s216 = scalar_lea.vmem [#allocation8], %s215
        %v217 = vld [vmem:[%s183] sm:$0xf]
        %vm218 = vcmask 1043456
        %v219 = vsel %vm218, %v217, 0.0
        %220 = vadd.xlane.f32.xlu0 %v219
        %v221 = vpop.xlane.xlu0 %220
        %v222 = vrot.slane %v221, 4
        %v223 = vadd.f32 %v221, %v222
        %v224 = vrot.slane %v223, 2
        %v225 = vadd.f32 %v223, %v224
        %v226 = vrot.slane %v225, 1
        %v227 = vadd.f32 %v225, %v226
        %v228 = vmul.f32 %v217, %v217
        %v229 = vsel %vm218, %v228, 0.0
        %230 = vadd.xlane.f32.xlu0 %v229
        %v231 = vpop.xlane.xlu0 %230
        %v232 = vrot.slane %v231, 4
        %v233 = vadd.f32 %v231, %v232
        %v234 = vrot.slane %v233, 2
        %v235 = vadd.f32 %v233, %v234
        %v236 = vrot.slane %v235, 1
        %v237 = vadd.f32 %v235, %v236
        %v238 = vmul.f32 %v227, 0.001953125
        %v239 = vmul.f32 %v237, 0.001953125
        %v240 = vmul.f32 %v238, %v238
        %v241 = vsub.f32 %v239, %v240
        %v242 = vmax.f32 %v241, 0.0
        %v243 = vadd.f32 %v242, 1e-05
        %v244 = vrsqrt.pop %v243
        %v245 = vmul.f32 %v244, %v243
        %v246 = vmul.f32 %v245, %v244
        %v247 = vmul.f32 0.5, %v246
        %v248 = vsub.f32 1.5, %v247
        %v249 = vmul.f32 %v244, %v248
        %vm250 = vweird.f32 %v243
        %vm251 = vweird.f32 %v244
        %vm252 = vmor %vm250, %vm251
        %v253 = vsel %vm252, %v244, %v249
        %v254 = vld [vmem:[#allocation5] sm:$0xf]
        %v255 = vld [vmem:[#allocation7] sm:$0xf]
        %v256 = vsub.f32 %v217, %v238
        %v257 = vmul.f32 %v256, %v253
        %v258 = vmul.f32 %v257, %v254
        %v259 = vadd.f32 %v258, %v255
        %260 = vst [vmem:[%s216] sm:$0xf] %v259
        %s261 = sand.u32 %s97, 1
        %s262 = scalar_lea.sflag [#allocation4], %s261
        %s263 = sand.u32 %s97, 1
        %s264 = smul.addr %s263, 4
        %s265 = scalar_lea.vmem [#allocation8], %s264
        // Predicated region
        $region45: #{tpu_custom_call.1} parent=31 // pred_check
          %p266 = pneg %p107
        $region46: #{tpu_custom_call.1} parent=31 // pred_check_branch
          %268 = sbr.rel (%p266) target = $region48
        $region47: #{tpu_custom_call.1} parent=31 // pred_region
          %270 = vsyncadd %s262, 0
          %s271 = smul.addr %s21, 4
          %s272 = scalar_lea.hbm %s3, %s271
          %s274 = sshll.u32 %s265, 4
          %s275 = int_to_ptr.vmem [resolvable:$true] %s274
          %s276 = sshll.u32 %s272, 4
          %s277 = int_to_ptr.hbm [resolvable:$true] %s276
          %279 = dma.vmem_to_hbm [thread:$0]  %s275, 64, %s277, %s262
        $region48: #{tpu_custom_call.1} parent=31 // pred_fallthru
          _
      $region32: #{tpu_custom_call.1} parent=5 // pred_fallthru
        _
      %p280 = scmp.le.s32.totalorder 2, %s16
      // Predicated region
      $region49: #{tpu_custom_call.1} parent=5 // pred_check
        %p281 = pneg %p280
      $region50: #{tpu_custom_call.1} parent=5 // pred_check_branch
        %283 = sbr.rel (%p281) target = $region52
      $region51: #{tpu_custom_call.1} parent=5 // pred_region
        %s284 = ssub.s32 %s16, 2
        // Predicated region
        $region53: #{tpu_custom_call.1} parent=51 // pred_check
          %p285 = pneg %p113
        $region54: #{tpu_custom_call.1} parent=51 // pred_check_branch
          %287 = sbr.rel (%p285) target = $region56
        $region55: #{tpu_custom_call.1} parent=51 // pred_region
          %s288 = sand.u32 %s98, 1
          %s289 = scalar_lea.sflag [#allocation4], %s288
          %s290 = sand.u32 %s98, 1
          %s291 = smul.addr %s290, 4
          %s292 = scalar_lea.vmem [#allocation8], %s291
          %294 = dma.done %s289, 64
        $region56: #{tpu_custom_call.1} parent=51 // pred_fallthru
          _
      $region52: #{tpu_custom_call.1} parent=5 // pred_fallthru
        _
    $region6: #{tpu_custom_call.1} parent=1 // loop_footer
      %s20 = sadd.s32 1, %s16
    $region7: #{tpu_custom_call.1} parent=1 // loop_footer_branch
      %15 = sbr.rel target = $region3
    $region8: #{tpu_custom_call.1} parent=1 // loop_exit
      _
    %295 = vsyncpa [#allocation3], 1
    %s296 = scalar_lea.sflag [#allocation3], 1
    %297 = vsyncpa %s296, 1
    %298 = vsyncpa [#allocation6], 1
    %299 = vsyncpa [#allocation4], 1
    %s300 = scalar_lea.sflag [#allocation4], 1
    %301 = vsyncpa %s300, 1

</llo_original>
